<compile_context>
chip_gen: v5e
topology: v5e:2x2
jax: 0.10.0
libtpu: 0.0.40
codegen_flags: <defaults>
</compile_context>

<pallas_src>
import math
from functools import partial

import numpy as np
import jax
import jax.numpy as jnp
from jax.experimental import pallas as pl
from jax.experimental.pallas import tpu as pltpu


def _round_up(n, m):
    return ((n + m - 1) // m) * m


def _supports_bf16_eup():
    """bf16 EUP exists on v6e/v7x; keep tanh in f32 on v5e and older/unknown."""
    try:
        kind = jax.devices()[0].device_kind.lower()
    except Exception:
        return False
    return ("v6" in kind) or ("v7" in kind) or ("tpu7" in kind)


def _plan(nn_dims):
    """Static packing plan shared by pack_params() and the kernel factory."""
    nn_dims = tuple(int(d) for d in nn_dims)
    in_dim = nn_dims[0]
    arch = tuple(nn_dims[1:])
    n_hidden = len(arch)
    base_rows = _round_up(in_dim, 8)          # zero-padded t/x "base" segment
    seg_dims = (base_rows,) + arch            # width of each concat segment
    wcols = max(seg_dims)

    # bf16 hidden-weight blocks: stacked along rows, columns padded to wcols.
    # w_meta[i] = [(row_off, d_seg), ...] for segments base, h_1, ..., h_i.
    w_meta = []
    roff = 0
    for i in range(n_hidden):
        layer = []
        for j in range(i + 1):
            layer.append((roff, seg_dims[j]))
            roff += _round_up(arch[i], 16)    # 16-row alignment for bf16 sublanes
        w_meta.append(layer)
    wh_rows = _round_up(max(roff, 16), 16)

    # f32 packed params (biases, output weights, output bias), one column.
    f_off = {}
    p = 0
    for i in range(n_hidden):
        f_off[("b", i)] = p
        p += _round_up(arch[i], 8)
    f_off[("wo", 0)] = p                      # base segment of out_layer weight
    p += base_rows
    for j in range(n_hidden):
        f_off[("wo", j + 1)] = p
        p += _round_up(arch[j], 8)
    f_off["b_out"] = p
    p += 8
    pf_rows = p
    return in_dim, arch, base_rows, seg_dims, wcols, w_meta, wh_rows, f_off, pf_rows


def pack_params(params, nn_dims):
    """One-time host-side preprocessing (hoisted out of the forward path).

    params = (hidden_ws, hidden_bs, w_out, b_out); hidden weights stored
    [in_features, out_features], biases [1, out_features], w_out [sum(nn_dims),1].
    Returns (wh_bf16 [R, wcols], pf_f32 [P, 1]).
    """
    hidden_ws, hidden_bs, w_out, b_out = params
    (in_dim, arch, base_rows, seg_dims, wcols,
     w_meta, wh_rows, f_off, pf_rows) = _plan(nn_dims)

    wh = np.zeros((wh_rows, wcols), np.float32)
    for i, layer in enumerate(w_meta):
        w = np.asarray(hidden_ws[i], np.float32)            # [in_i, out_i]
        for j, (roff, _) in enumerate(layer):
            if j == 0:                                       # base (t + x) rows
                wh[roff:roff + arch[i], 0:in_dim] = w[0:in_dim, :].T
            else:                                            # hidden seg h_j
                lo = in_dim + sum(arch[:j - 1])
                hi = lo + arch[j - 1]
                wh[roff:roff + arch[i], 0:arch[j - 1]] = w[lo:hi, :].T

    pf = np.zeros((pf_rows, 1), np.float32)
    for i in range(len(arch)):
        o = f_off[("b", i)]
        pf[o:o + arch[i], 0] = np.asarray(hidden_bs[i], np.float32).reshape(-1)
    wo = np.asarray(w_out, np.float32).reshape(-1)           # [sum(nn_dims)]
    o = f_off[("wo", 0)]
    pf[o:o + in_dim, 0] = wo[0:in_dim]
    off = in_dim
    for j in range(len(arch)):
        o = f_off[("wo", j + 1)]
        pf[o:o + arch[j], 0] = wo[off:off + arch[j]]
        off += arch[j]
    pf[f_off["b_out"], 0] = np.asarray(b_out, np.float32).reshape(-1)[0]

    return jnp.asarray(wh, jnp.bfloat16), jnp.asarray(pf, jnp.float32)


def _make_kernel(nn_dims, act_bf16):
    (in_dim, arch, base_rows, seg_dims, wcols,
     w_meta, wh_rows, f_off, pf_rows) = _plan(nn_dims)
    n_hidden = len(arch)

    def kernel(base_ref, wh_ref, pf_ref, out_ref):
        base_f32 = base_ref[...]                             # [base_rows, tb]
        base_mxu = base_f32.astype(jnp.bfloat16)             # for MXU dots

        # Eager output-layer accumulation (keeps vreg liveness low).
        o0 = f_off[("wo", 0)]
        out_acc = jnp.sum(pf_ref[o0:o0 + base_rows, :] * base_f32,
                          axis=0, keepdims=True)             # [1, tb] f32

        segs = [base_mxu]                                    # bf16 segments
        for i in range(n_hidden):                            # static layer loop
            out_i = arch[i]
            b_off = f_off[("b", i)]
            z = pf_ref[b_off:b_off + out_i, :]               # [out_i, 1] bias
            for (roff, d), h in zip(w_meta[i], segs):
                wblk = wh_ref[roff:roff + out_i, 0:d]        # [out_i, d] bf16
                z = z + jnp.dot(wblk, h, preferred_element_type=jnp.float32)
            if act_bf16:
                h_new = jnp.tanh(z.astype(jnp.bfloat16))     # bf16 EUP (v6e/v7x)
                h_for_out = h_new
            else:
                h_f32 = jnp.tanh(z)                          # f32 EUP (v5e safe)
                h_new = h_f32.astype(jnp.bfloat16)
                h_for_out = h_f32
            oo = f_off[("wo", i + 1)]
            out_acc = out_acc + jnp.sum(pf_ref[oo:oo + out_i, :] * h_for_out,
                                        axis=0, keepdims=True)
            segs.append(h_new)

        bo = f_off["b_out"]
        out_ref[...] = out_acc + pf_ref[bo:bo + 1, :]        # + b_out, [1, tb]

    return kernel


@partial(jax.jit, static_argnames=("nn_dims", "tile_b", "act_bf16"))
def densenet_forward(t, x, wh, pf, *, nn_dims, tile_b=1024, act_bf16=False):
    """t: [B,1], x: [B, in_dim-1]; wh/pf from pack_params(). Returns [B,1]."""
    nn_dims = tuple(int(d) for d in nn_dims)
    in_dim = nn_dims[0]
    base_rows = _round_up(in_dim, 8)
    B = t.shape[0]
    assert x.shape == (B, in_dim - 1)
    # TODO(synk): ragged batches unsupported; pad B to a multiple of tile_b.
    assert B % tile_b == 0 and tile_b % 128 == 0

    # Feature-major, zero-padded base segment: rows = [t, x_0..x_{d-2}, 0...].
    tT = jnp.reshape(t.astype(jnp.float32), (1, B))
    xT = jnp.transpose(x.astype(jnp.float32))                # [in_dim-1, B]
    pad = jnp.zeros((base_rows - in_dim, B), jnp.float32)
    base = jnp.concatenate([tT, xT, pad], axis=0)            # [base_rows, B]

    kernel = _make_kernel(nn_dims, act_bf16)

    out_row = pl.pallas_call(
        kernel,
        out_shape=jax.ShapeDtypeStruct((1, B), jnp.float32),
        grid_spec=pltpu.PrefetchScalarGridSpec(
            num_scalar_prefetch=0,
            grid=(B // tile_b,),
            in_specs=[
                pl.BlockSpec((base_rows, tile_b), lambda i: (0, i)),
                # Packed weights/params are tiny and grid-invariant: whole
                # array, constant block index (no re-fetch across steps).
                pl.BlockSpec(wh.shape, lambda i: (0, 0)),
                pl.BlockSpec(pf.shape, lambda i: (0, 0)),
            ],
            out_specs=pl.BlockSpec((1, tile_b), lambda i: (0, i)),
        ),
        compiler_params=pltpu.CompilerParams(dimension_semantics=("parallel",)),
    )(base, wh, pf)

    return out_row.reshape(B, 1)


def init_params(key, nn_dims):
    """Deterministic PyTorch-Linear-style init; hidden weights stored [in, out]."""
    nn_dims = tuple(int(d) for d in nn_dims)
    n_layers = len(nn_dims) - 1
    hidden_ws, hidden_bs = [], []
    keys = jax.random.split(key, 2 * (n_layers + 1))
    cum = nn_dims[0]
    for i in range(n_layers):
        fan_in = cum
        bound = 1.0 / math.sqrt(fan_in)
        w = jax.random.uniform(keys[2 * i], (fan_in, nn_dims[i + 1]),
                               minval=-bound, maxval=bound, dtype=jnp.float32)
        b = jax.random.uniform(keys[2 * i + 1], (1, nn_dims[i + 1]),
                               minval=-bound, maxval=bound, dtype=jnp.float32)
        hidden_ws.append(w)
        hidden_bs.append(b)
        cum += nn_dims[i + 1]
    total = sum(nn_dims)
    bound = 1.0 / math.sqrt(total)
    w_out = jax.random.uniform(keys[-2], (total, 1),
                               minval=-bound, maxval=bound, dtype=jnp.float32)
    b_out = jax.random.uniform(keys[-1], (1, 1),
                               minval=-bound, maxval=bound, dtype=jnp.float32)
    return hidden_ws, hidden_bs, w_out, b_out


def densenet_reference(t, x, params, nn_dims):
    """Pure-JAX f32 reference mirroring the PyTorch forward."""
    hidden_ws, hidden_bs, w_out, b_out = params
    tensor = jnp.concatenate([t, x], axis=1).astype(jnp.float32)
    for w, b in zip(hidden_ws, hidden_bs):
        h = jnp.tanh(tensor @ w + b)
        tensor = jnp.concatenate([tensor, h], axis=1)
    return tensor @ w_out + b_out


if __name__ == "__main__":
    # DenseNet(in_dim=4, arch=[32, 32], act_fn=tanh); t is [B,1], x is [B,3].
    in_dim = 4
    arch = (32, 32)
    nn_dims = (in_dim,) + arch

    key = jax.random.PRNGKey(0)
    k_t, k_x, k_p = jax.random.split(key, 3)
    B = 2048
    tile_b = 1024  # grid=2: one step per TC on v7x, 2 cheap steps on v5e/v6e
    t = jax.random.normal(k_t, (B, 1), dtype=jnp.float32)
    x = jax.random.normal(k_x, (B, in_dim - 1), dtype=jnp.float32)

    params = init_params(k_p, nn_dims)
    wh, pf = pack_params(params, nn_dims)        # hoisted, once per param set
    act_bf16 = _supports_bf16_eup()              # bf16 tanh only on v6e/v7x

    out = densenet_forward(t, x, wh, pf, nn_dims=nn_dims,
                           tile_b=tile_b, act_bf16=act_bf16)
    out = jax.block_until_ready(out)

    ref = densenet_reference(t, x, params, nn_dims)
    assert out.shape == (B, 1)
    # bf16 MXU weights (f32 accumulate) + optional bf16 tanh -> loosened tol.
    err = float(jnp.max(jnp.abs(out - ref)))
    assert err < 3e-2, f"max abs err = {err}"

    print("KERNEL_OK")
</pallas_src>

<mosaic_0001>
module attributes {stable_mosaic.version = 11 : i64} {
  func.func @kernel(%arg0: i32, %arg1: memref<8x1024xf32, #tpu.memory_space<vmem>>, %arg2: memref<96x32xbf16, #tpu.memory_space<vmem>>, %arg3: memref<144x1xf32, #tpu.memory_space<vmem>>, %arg4: memref<1x1024xf32, #tpu.memory_space<vmem>>) attributes {dimension_semantics = [#tpu.dimension_semantics<parallel>], iteration_bounds = array<i64: 2>, scalar_prefetch = 0 : i64, scratch_operands = 0 : i64, tpu.core_type = #tpu.core_type<tc>, window_params = [{transform_indices = @transform_0, window_bounds = array<i64: 8, 1024>}, {pipeline_mode = #tpu.pipeline_mode<synchronous>, transform_indices = @transform_1, window_bounds = array<i64: 96, 32>}, {pipeline_mode = #tpu.pipeline_mode<synchronous>, transform_indices = @transform_2, window_bounds = array<i64: 144, 1>}, {transform_indices = @transform_3, window_bounds = array<i64: 1, 1024>}]} {
    %c0 = arith.constant 0 : index
    %c0_0 = arith.constant 0 : index
    %0 = vector.load %arg1[%c0, %c0_0] : memref<8x1024xf32, #tpu.memory_space<vmem>>, vector<8x1024xf32>
    %1 = arith.truncf %0 : vector<8x1024xf32> to vector<8x1024xbf16>
    %c64 = arith.constant 64 : index
    %c0_1 = arith.constant 0 : index
    %2 = vector.load %arg3[%c64, %c0_1] : memref<144x1xf32, #tpu.memory_space<vmem>>, vector<8x1xf32>
    %3 = vector.broadcast %2 : vector<8x1xf32> to vector<8x1024xf32>
    %4 = arith.mulf %3, %0 : vector<8x1024xf32>
    %cst = arith.constant dense<0.000000e+00> : vector<1024xf32>
    %5 = vector.multi_reduction <add>, %4, %cst [0] : vector<8x1024xf32> to vector<1024xf32>
    %6 = vector.shape_cast %5 : vector<1024xf32> to vector<1x1024xf32>
    %c0_2 = arith.constant 0 : index
    %c0_3 = arith.constant 0 : index
    %7 = vector.load %arg3[%c0_2, %c0_3] : memref<144x1xf32, #tpu.memory_space<vmem>>, vector<32x1xf32>
    %c0_4 = arith.constant 0 : index
    %c0_5 = arith.constant 0 : index
    %8 = vector.load %arg2[%c0_4, %c0_5] : memref<96x32xbf16, #tpu.memory_space<vmem>>, vector<32x8xbf16>
    %cst_6 = arith.constant dense<0.000000e+00> : vector<32x1024xf32>
    %9 = tpu.matmul %8, %1, %cst_6 {dimension_numbers = #tpu.dot_dimension_numbers<[1], [0], [0], [1], [0, 0, 1, 1], [], []>} : vector<32x8xbf16>, vector<8x1024xbf16>, vector<32x1024xf32> -> vector<32x1024xf32>
    %10 = vector.broadcast %7 : vector<32x1xf32> to vector<32x1024xf32>
    %11 = arith.addf %10, %9 : vector<32x1024xf32>
    %12 = math.tanh %11 : vector<32x1024xf32>
    %13 = arith.truncf %12 : vector<32x1024xf32> to vector<32x1024xbf16>
    %c72 = arith.constant 72 : index
    %c0_7 = arith.constant 0 : index
    %14 = vector.load %arg3[%c72, %c0_7] : memref<144x1xf32, #tpu.memory_space<vmem>>, vector<32x1xf32>
    %15 = vector.broadcast %14 : vector<32x1xf32> to vector<32x1024xf32>
    %16 = arith.mulf %15, %12 : vector<32x1024xf32>
    %cst_8 = arith.constant dense<0.000000e+00> : vector<1024xf32>
    %17 = vector.multi_reduction <add>, %16, %cst_8 [0] : vector<32x1024xf32> to vector<1024xf32>
    %18 = vector.shape_cast %17 : vector<1024xf32> to vector<1x1024xf32>
    %19 = arith.addf %6, %18 : vector<1x1024xf32>
    %c32 = arith.constant 32 : index
    %c0_9 = arith.constant 0 : index
    %20 = vector.load %arg3[%c32, %c0_9] : memref<144x1xf32, #tpu.memory_space<vmem>>, vector<32x1xf32>
    %c32_10 = arith.constant 32 : index
    %c0_11 = arith.constant 0 : index
    %21 = vector.load %arg2[%c32_10, %c0_11] : memref<96x32xbf16, #tpu.memory_space<vmem>>, vector<32x8xbf16>
    %cst_12 = arith.constant dense<0.000000e+00> : vector<32x1024xf32>
    %22 = tpu.matmul %21, %1, %cst_12 {dimension_numbers = #tpu.dot_dimension_numbers<[1], [0], [0], [1], [0, 0, 1, 1], [], []>} : vector<32x8xbf16>, vector<8x1024xbf16>, vector<32x1024xf32> -> vector<32x1024xf32>
    %23 = vector.broadcast %20 : vector<32x1xf32> to vector<32x1024xf32>
    %24 = arith.addf %23, %22 : vector<32x1024xf32>
    %c64_13 = arith.constant 64 : index
    %c0_14 = arith.constant 0 : index
    %25 = vector.load %arg2[%c64_13, %c0_14] : memref<96x32xbf16, #tpu.memory_space<vmem>>, vector<32x32xbf16>
    %cst_15 = arith.constant dense<0.000000e+00> : vector<32x1024xf32>
    %26 = tpu.matmul %25, %13, %cst_15 {dimension_numbers = #tpu.dot_dimension_numbers<[1], [0], [0], [1], [0, 0, 1, 1], [], []>} : vector<32x32xbf16>, vector<32x1024xbf16>, vector<32x1024xf32> -> vector<32x1024xf32>
    %27 = arith.addf %24, %26 : vector<32x1024xf32>
    %28 = math.tanh %27 : vector<32x1024xf32>
    %c104 = arith.constant 104 : index
    %c0_16 = arith.constant 0 : index
    %29 = vector.load %arg3[%c104, %c0_16] : memref<144x1xf32, #tpu.memory_space<vmem>>, vector<32x1xf32>
    %30 = vector.broadcast %29 : vector<32x1xf32> to vector<32x1024xf32>
    %31 = arith.mulf %30, %28 : vector<32x1024xf32>
    %cst_17 = arith.constant dense<0.000000e+00> : vector<1024xf32>
    %32 = vector.multi_reduction <add>, %31, %cst_17 [0] : vector<32x1024xf32> to vector<1024xf32>
    %33 = vector.shape_cast %32 : vector<1024xf32> to vector<1x1024xf32>
    %34 = arith.addf %19, %33 : vector<1x1024xf32>
    %c136 = arith.constant 136 : index
    %c0_18 = arith.constant 0 : index
    %35 = vector.load %arg3[%c136, %c0_18] : memref<144x1xf32, #tpu.memory_space<vmem>>, vector<1x1xf32>
    %36 = vector.broadcast %35 : vector<1x1xf32> to vector<1x1024xf32>
    %37 = arith.addf %34, %36 : vector<1x1024xf32>
    %c0_19 = arith.constant 0 : index
    %c0_20 = arith.constant 0 : index
    %38 = vector.load %arg4[%c0_19, %c0_20] : memref<1x1024xf32, #tpu.memory_space<vmem>>, vector<1x1024xf32>
    tpu.vector_store %arg4[%c0_19, %c0_20], %37 {strides = array<i32>} : memref<1x1024xf32, #tpu.memory_space<vmem>>, vector<1x1024xf32>,
    return
  }
  func.func @transform_0(%arg0: i32) -> (i32, i32) {
    %c0_i32 = arith.constant 0 : i32
    %c0_i32_0 = arith.constant 0 : i32
    return %c0_i32, %arg0 : i32, i32
  }
  func.func @transform_1(%arg0: i32) -> (i32, i32) {
    %c0_i32 = arith.constant 0 : i32
    %c0_i32_0 = arith.constant 0 : i32
    %c0_i32_1 = arith.constant 0 : i32
    return %c0_i32, %c0_i32_0 : i32, i32
  }
  func.func @transform_2(%arg0: i32) -> (i32, i32) {
    %c0_i32 = arith.constant 0 : i32
    %c0_i32_0 = arith.constant 0 : i32
    %c0_i32_1 = arith.constant 0 : i32
    return %c0_i32, %c0_i32_0 : i32, i32
  }
  func.func @transform_3(%arg0: i32) -> (i32, i32) {
    %c0_i32 = arith.constant 0 : i32
    %c0_i32_0 = arith.constant 0 : i32
    return %c0_i32, %arg0 : i32, i32
  }
}

</mosaic_0001>

<llo_original>
// kernel: densenet_forward.1
$region0: #{densenet_forward.1}
  #allocation0 [shape = 'u32[]', space=smem, size = 0x4, offset = 0x4, fixed_abs, tag = 'smem constant byte address 0x4 - core index']
  #allocation1 [shape = 'u32[72,128]{1,0:T(1,128)}', space=vmem, size = 0x9000, scoped, tag = 'internal scratch']
  %s0 = inlined_call_operand.vmem [shape: f32[8,2048], index: 0, kind: input, shape index: {}]
  %s1 = inlined_call_operand.vmem [shape: bf16[96,32], index: 1, kind: input, shape index: {}]
  %s2 = inlined_call_operand.vmem [shape: f32[144,1], index: 2, kind: input, shape index: {}]
  %s3 = inlined_call_operand.hbm [shape: f32[1,2048], index: 3, kind: output, shape index: {}]
  %s4 = sld [smem:[#allocation0]]
  $region45: #{densenet_forward.1} parent=0
    _
  %s6 = ssub.s32 1, %s4
  %s7 = scalar_select 0, %s6, %s4
  $region1: #{densenet_forward.1} parent=0
    #allocation2 [shape = 'u8[8192]{0}', space=vmem, size = 0x2000, scoped, tag = 'output window, operand 0']
    #allocation3 [shape = 's32[2]{0}', space=sflag, size = 0x8, scoped, tag = 'scoped memory for densenet_forward.1']
    %8 = vsyncpa [#allocation3], 0
    %s9 = scalar_lea.sflag [#allocation3], 1
    %10 = vsyncpa %s9, 0
    loop: start=0, step=1, limit=4
    $region2: #{densenet_forward.1} parent=1 // loop_pre_header
      _
    $region3: #{densenet_forward.1} parent=1 // loop_header
      %s12 = sphi 0, %s16
      %p13 = scmp.ge.s32.totalorder %s12, 4
      %s22 = sphi 0, %s24
      %s25 = sphi 0, %s22
      %s26 = sphi 0, %s25
      %s42 = sphi 0, %s26
      %s46 = sphi 0, %s46
      %s48 = sphi 0, %s46
      %s49 = sphi 0, %s48
      %s63 = sphi 0, %s49
      %s67 = sphi 0, %s67
      %s69 = sphi 0, %s67
      %s70 = sphi 0, %s69
      %s84 = sphi 0, %s70
      %s90 = sphi 0, %s92
      %s93 = sphi 0, %s90
      %s94 = sphi 0, %s93
      %s110 = sphi 0, %s94
    $region4: #{densenet_forward.1} parent=1 // loop_header_branch
      %15 = sbr.rel (%p13) target = $region8
    $region5: #{densenet_forward.1} parent=1 // loop_body
      %s17 = ssub.s32 %s12, 1
      %s18 = ssub.s32 %s12, 2
      %s19 = sadd.s32 %s12, 1
      %s20 = ssub.s32 %s12, %s19
      %p21 = scmp.eq.s32.totalorder %s20, 0
      %s23 = sadd.s32 %s22, 1
      %s24 = scalar_select %p21, %s22, %s23
      %p27 = pneg %p21
      %p28 = scmp.eq.s32.totalorder %s12, 1
      %p29 = por %p27, %p28
      %p30 = scmp.ne.s32.totalorder %s22, %s25
      %p31 = scmp.eq.s32.totalorder %s12, 0
      %p32 = por %p30, %p31
      %p33 = scmp.ne.s32.totalorder %s22, %s25
      %p34 = scmp.eq.s32.totalorder %s17, 1
      %p35 = por %p33, %p34
      %p36 = scmp.ne.s32.totalorder %s25, %s26
      %p37 = scmp.eq.s32.totalorder %s17, 0
      %p38 = por %p36, %p37
      %p39 = scmp.ne.s32.totalorder %s25, %s26
      %p40 = scmp.eq.s32.totalorder %s18, 1
      %p41 = por %p39, %p40
      %p43 = scmp.ne.s32.totalorder %s26, %s42
      %p44 = scmp.eq.s32.totalorder %s18, 0
      %p45 = por %p43, %p44
      %s47 = sadd.s32 %s46, 1
      %p50 = scmp.eq.s32.totalorder %s12, 1
      %p51 = scmp.ne.s32.totalorder %s46, %s48
      %p52 = scmp.eq.s32.totalorder %s12, 0
      %p53 = por %p51, %p52
      %p54 = scmp.ne.s32.totalorder %s46, %s48
      %p55 = scmp.eq.s32.totalorder %s17, 1
      %p56 = por %p54, %p55
      %p57 = scmp.ne.s32.totalorder %s48, %s49
      %p58 = scmp.eq.s32.totalorder %s17, 0
      %p59 = por %p57, %p58
      %p60 = scmp.ne.s32.totalorder %s48, %s49
      %p61 = scmp.eq.s32.totalorder %s18, 1
      %p62 = por %p60, %p61
      %p64 = scmp.ne.s32.totalorder %s49, %s63
      %p65 = scmp.eq.s32.totalorder %s18, 0
      %p66 = por %p64, %p65
      %s68 = sadd.s32 %s67, 1
      %p71 = scmp.eq.s32.totalorder %s12, 1
      %p72 = scmp.ne.s32.totalorder %s67, %s69
      %p73 = scmp.eq.s32.totalorder %s12, 0
      %p74 = por %p72, %p73
      %p75 = scmp.ne.s32.totalorder %s67, %s69
      %p76 = scmp.eq.s32.totalorder %s17, 1
      %p77 = por %p75, %p76
      %p78 = scmp.ne.s32.totalorder %s69, %s70
      %p79 = scmp.eq.s32.totalorder %s17, 0
      %p80 = por %p78, %p79
      %p81 = scmp.ne.s32.totalorder %s69, %s70
      %p82 = scmp.eq.s32.totalorder %s18, 1
      %p83 = por %p81, %p82
      %p85 = scmp.ne.s32.totalorder %s70, %s84
      %p86 = scmp.eq.s32.totalorder %s18, 0
      %p87 = por %p85, %p86
      %s88 = ssub.s32 %s12, %s19
      %p89 = scmp.eq.s32.totalorder %s88, 0
      %s91 = sadd.s32 %s90, 1
      %s92 = scalar_select %p89, %s90, %s91
      %p95 = pneg %p89
      %p96 = scmp.eq.s32.totalorder %s12, 1
      %p97 = por %p95, %p96
      %p98 = scmp.ne.s32.totalorder %s90, %s93
      %p99 = scmp.eq.s32.totalorder %s12, 0
      %p100 = por %p98, %p99
      %p101 = scmp.ne.s32.totalorder %s90, %s93
      %p102 = scmp.eq.s32.totalorder %s17, 1
      %p103 = por %p101, %p102
      %p104 = scmp.ne.s32.totalorder %s93, %s94
      %p105 = scmp.eq.s32.totalorder %s17, 0
      %p106 = por %p104, %p105
      %p107 = scmp.ne.s32.totalorder %s93, %s94
      %p108 = scmp.eq.s32.totalorder %s18, 1
      %p109 = por %p107, %p108
      %p111 = scmp.ne.s32.totalorder %s94, %s110
      %p112 = scmp.eq.s32.totalorder %s18, 0
      %p113 = por %p111, %p112
      %p114 = scmp.le.s32.totalorder 1, %s12
      %p115 = scmp.lt.s32.totalorder %s12, 3
      %p116 = pnand %p114, %p115
      %p117 = pneg %p116
      // Predicated region
      $region9: #{densenet_forward.1} parent=5 // pred_check
        _
      $region10: #{densenet_forward.1} parent=5 // pred_check_branch
        %119 = sbr.rel (%p116) target = $region12
      $region11: #{densenet_forward.1} parent=5 // pred_region
        %s120 = ssub.s32 %s12, 1
        // Predicated region
        $region13: #{densenet_forward.1} parent=11 // pred_check
          %p121 = pneg %p59
        $region14: #{densenet_forward.1} parent=11 // pred_check_branch
          %123 = sbr.rel (%p121) target = $region16
        $region15: #{densenet_forward.1} parent=11 // pred_region
          _
        $region16: #{densenet_forward.1} parent=11 // pred_fallthru
          _
        // Predicated region
        $region17: #{densenet_forward.1} parent=11 // pred_check
          %p124 = pneg %p80
        $region18: #{densenet_forward.1} parent=11 // pred_check_branch
          %126 = sbr.rel (%p124) target = $region20
        $region19: #{densenet_forward.1} parent=11 // pred_region
          _
        $region20: #{densenet_forward.1} parent=11 // pred_fallthru
          _
      $region12: #{densenet_forward.1} parent=5 // pred_fallthru
        _
      %p127 = scmp.lt.s32.totalorder %s12, 2
      // Predicated region
      $region21: #{densenet_forward.1} parent=5 // pred_check
        %p128 = pneg %p127
      $region22: #{densenet_forward.1} parent=5 // pred_check_branch
        %130 = sbr.rel (%p128) target = $region24
      $region23: #{densenet_forward.1} parent=5 // pred_region
        // Predicated region
        $region25: #{densenet_forward.1} parent=23 // pred_check
          %p131 = pneg %p32
        $region26: #{densenet_forward.1} parent=23 // pred_check_branch
          %133 = sbr.rel (%p131) target = $region28
        $region27: #{densenet_forward.1} parent=23 // pred_region
          %s134 = smul.u32 8, %s12
          %p135 = scmp.lt.s32.totalorder %s134, 15
          %s136 = scalar_select %p135, %s134, 15
          %s137 = smul.addr %s136, 8
          %s138 = scalar_lea.vmem %s0, %s137
          %s139 = smul.u32 8, %s12
        $region28: #{densenet_forward.1} parent=23 // pred_fallthru
          _
      $region24: #{densenet_forward.1} parent=5 // pred_fallthru
        _
      %p140 = scmp.le.s32.totalorder 1, %s12
      %p141 = scmp.lt.s32.totalorder %s12, 3
      %p142 = pnand %p140, %p141
      %p143 = pneg %p142
      // Predicated region
      $region29: #{densenet_forward.1} parent=5 // pred_check
        _
      $region30: #{densenet_forward.1} parent=5 // pred_check_branch
        %145 = sbr.rel (%p142) target = $region32
      $region31: #{densenet_forward.1} parent=5 // pred_region
        %s146 = ssub.s32 %s12, 1
        %s147 = smul.u32 8, %s17
        %p148 = scmp.lt.s32.totalorder %s147, 15
        %s149 = scalar_select %p148, %s147, 15
        %s150 = smul.addr %s149, 8
        %s151 = scalar_lea.vmem %s0, %s150
        %p152 = pneg %p38
        %p153 = pneg %p35
        %p154 = pneg %p59
        %p155 = pneg %p56
        %p156 = pneg %p80
        %p157 = pneg %p77
        %p158 = pneg %p106
        %p159 = pneg %p103
        %s160 = sand.u32 %s93, 1
        %s161 = scalar_lea.sflag [#allocation3], %s160
        %s162 = sand.u32 %s93, 1
        %s163 = smul.addr %s162, 8
        %s164 = scalar_lea.vmem [#allocation2], %s163
        %s165 = smul.u32 8, %s17
        %p166 = scmp.lt.s32.totalorder %s165, 15
        %s167 = scalar_select %p166, %s165, 15
        %s168 = smul.addr %s167, 8
        %s169 = scalar_lea.vmem %s0, %s168
        %s170 = smul.u32 8, %s17
        %s171 = smul.u32 8, %s17
        %v173 = vld [vmem:[%s169] sm:$0xff]
        %v174 = vld [vmem:[%s169 + $0x8] sm:$0xff]
        %v175 = vld [vmem:[%s169 + $0x10] sm:$0xff]
        %v176 = vld [vmem:[%s169 + $0x18] sm:$0xff]
        %v177 = vld [vmem:[%s169 + $0x20] sm:$0xff]
        %v178 = vld [vmem:[%s169 + $0x28] sm:$0xff]
        %v179 = vld [vmem:[%s169 + $0x30] sm:$0xff]
        %v180 = vld [vmem:[%s169 + $0x38] sm:$0xff]
        %v181 = vpack.c.bf16 %v173, %v173
        %v182 = vpack.c.bf16 %v174, %v174
        %v183 = vpack.c.bf16 %v175, %v175
        %v184 = vpack.c.bf16 %v176, %v176
        %v185 = vpack.c.bf16 %v177, %v177
        %v186 = vpack.c.bf16 %v178, %v178
        %v187 = vpack.c.bf16 %v179, %v179
        %v188 = vpack.c.bf16 %v180, %v180
        %v189 = vld [vmem:[%s2 + $0x40] sm:$0xff]
        %191 = vset.pattern.permute.xlu0 0
        %192 = vperm.xlu0 %191, %v189
        %v193 = vpop.permute.xlu0 %192
        %v195 = vmul.f32 %v193, %v173
        %v196 = vmul.f32 %v193, %v174
        %v197 = vmul.f32 %v193, %v175
        %v198 = vmul.f32 %v193, %v176
        %v199 = vmul.f32 %v193, %v177
        %v200 = vmul.f32 %v193, %v178
        %v201 = vmul.f32 %v193, %v179
        %v202 = vmul.f32 %v193, %v180
        %v203 = vrot.slane %v195, 4
        %v204 = vadd.f32 %v195, %v203
        %v205 = vrot.slane %v204, 2
        %v206 = vadd.f32 %v204, %v205
        %v207 = vrot.slane %v206, 1
        %v208 = vadd.f32 %v206, %v207
        %v209 = vrot.slane %v196, 4
        %v210 = vadd.f32 %v196, %v209
        %v211 = vrot.slane %v210, 2
        %v212 = vadd.f32 %v210, %v211
        %v213 = vrot.slane %v212, 1
        %v214 = vadd.f32 %v212, %v213
        %v215 = vrot.slane %v197, 4
        %v216 = vadd.f32 %v197, %v215
        %v217 = vrot.slane %v216, 2
        %v218 = vadd.f32 %v216, %v217
        %v219 = vrot.slane %v218, 1
        %v220 = vadd.f32 %v218, %v219
        %v221 = vrot.slane %v198, 4
        %v222 = vadd.f32 %v198, %v221
        %v223 = vrot.slane %v222, 2
        %v224 = vadd.f32 %v222, %v223
        %v225 = vrot.slane %v224, 1
        %v226 = vadd.f32 %v224, %v225
        %v227 = vrot.slane %v199, 4
        %v228 = vadd.f32 %v199, %v227
        %v229 = vrot.slane %v228, 2
        %v230 = vadd.f32 %v228, %v229
        %v231 = vrot.slane %v230, 1
        %v232 = vadd.f32 %v230, %v231
        %v233 = vrot.slane %v200, 4
        %v234 = vadd.f32 %v200, %v233
        %v235 = vrot.slane %v234, 2
        %v236 = vadd.f32 %v234, %v235
        %v237 = vrot.slane %v236, 1
        %v238 = vadd.f32 %v236, %v237
        %v239 = vrot.slane %v201, 4
        %v240 = vadd.f32 %v201, %v239
        %v241 = vrot.slane %v240, 2
        %v242 = vadd.f32 %v240, %v241
        %v243 = vrot.slane %v242, 1
        %v244 = vadd.f32 %v242, %v243
        %v245 = vrot.slane %v202, 4
        %v246 = vadd.f32 %v202, %v245
        %v247 = vrot.slane %v246, 2
        %v248 = vadd.f32 %v246, %v247
        %v249 = vrot.slane %v248, 1
        %v250 = vadd.f32 %v248, %v249
        %v251 = vld [vmem:[%s2] sm:$0xff]
        %v252 = vld [vmem:[%s2 + $0x8] sm:$0xff]
        %v253 = vld [vmem:[%s2 + $0x10] sm:$0xff]
        %v254 = vld [vmem:[%s2 + $0x18] sm:$0xff]
        %v255 = vld [vmem:[%s1] sm:$0xf]
        %v256 = vld [vmem:[%s1 + $0x4] sm:$0xf]
        %v257 = vld [vmem:[%s1 + $0x8] sm:$0xf]
        %v258 = vld [vmem:[%s1 + $0xc] sm:$0xf]
        %v263 = vunpack.c.l.b16 %v255
        %v264 = vunpack.c.l.b16 %v256
        %v265 = vunpack.c.l.b16 %v257
        %v266 = vunpack.c.l.b16 %v258
        %v267 = vpack.c.b16 %v264, %v263
        %v268 = vpack.c.b16 %v266, %v265
        %vm269 = vcmask 64512
        %v271 = vsel %vm269, %v267, 0
        %v274 = vsel %vm269, %v268, 0
        %vm276 = vcmask 1043456
        %v278 = vsel %vm276, %v181, 0
        %v281 = vsel %vm276, %v182, 0
        %v284 = vsel %vm276, %v183, 0
        %v287 = vsel %vm276, %v184, 0
        %v290 = vsel %vm276, %v185, 0
        %v293 = vsel %vm276, %v186, 0
        %v296 = vsel %vm276, %v187, 0
        %v299 = vsel %vm276, %v188, 0
        %301 = vmatpush.bf16.msra.mxu0 0
        %302 = vmatpush.bf16.msra.mxu0 0
        %303 = vmatpush.bf16.msra.mxu0 0
        %304 = vmatpush.bf16.msra.mxu0 0
        %305 = vmatpush.bf16.msra.mxu0 0
        %306 = vmatpush.bf16.msra.mxu0 0
        %307 = vmatpush.bf16.msra.mxu0 0
        %308 = vmatpush.bf16.msra.mxu0 %v278
        %309 = vmatmul.bf16.gmra.mxu0 %v271
        %v310 = vpop.f32.mrf.mxu0
        %v311 = vadd.f32 0.0, %v310
        %v312 = vpop.f32.mrf.mxu0
        %v313 = vadd.f32 0.0, %v312
        %314 = vmatmul.bf16.gmra.mxu0 %v274
        %v315 = vpop.f32.mrf.mxu0
        %v316 = vadd.f32 0.0, %v315
        %v317 = vpop.f32.mrf.mxu0
        %v318 = vadd.f32 0.0, %v317
        %319 = vdwg.mxu0
        %320 = vmatpush.bf16.msra.mxu0 0
        %321 = vmatpush.bf16.msra.mxu0 0
        %322 = vmatpush.bf16.msra.mxu0 0
        %323 = vmatpush.bf16.msra.mxu0 0
        %324 = vmatpush.bf16.msra.mxu0 0
        %325 = vmatpush.bf16.msra.mxu0 0
        %326 = vmatpush.bf16.msra.mxu0 0
        %327 = vmatpush.bf16.msra.mxu0 %v281
        %328 = vmatmul.bf16.gmra.mxu0 %v271
        %v329 = vpop.f32.mrf.mxu0
        %v330 = vadd.f32 0.0, %v329
        %v331 = vpop.f32.mrf.mxu0
        %v332 = vadd.f32 0.0, %v331
        %333 = vmatmul.bf16.gmra.mxu0 %v274
        %v334 = vpop.f32.mrf.mxu0
        %v335 = vadd.f32 0.0, %v334
        %v336 = vpop.f32.mrf.mxu0
        %v337 = vadd.f32 0.0, %v336
        %338 = vdwg.mxu0
        %339 = vmatpush.bf16.msra.mxu0 0
        %340 = vmatpush.bf16.msra.mxu0 0
        %341 = vmatpush.bf16.msra.mxu0 0
        %342 = vmatpush.bf16.msra.mxu0 0
        %343 = vmatpush.bf16.msra.mxu0 0
        %344 = vmatpush.bf16.msra.mxu0 0
        %345 = vmatpush.bf16.msra.mxu0 0
        %346 = vmatpush.bf16.msra.mxu0 %v284
        %347 = vmatmul.bf16.gmra.mxu0 %v271
        %v348 = vpop.f32.mrf.mxu0
        %v349 = vadd.f32 0.0, %v348
        %v350 = vpop.f32.mrf.mxu0
        %v351 = vadd.f32 0.0, %v350
        %352 = vmatmul.bf16.gmra.mxu0 %v274
        %v353 = vpop.f32.mrf.mxu0
        %v354 = vadd.f32 0.0, %v353
        %v355 = vpop.f32.mrf.mxu0
        %v356 = vadd.f32 0.0, %v355
        %357 = vdwg.mxu0
        %358 = vmatpush.bf16.msra.mxu0 0
        %359 = vmatpush.bf16.msra.mxu0 0
        %360 = vmatpush.bf16.msra.mxu0 0
        %361 = vmatpush.bf16.msra.mxu0 0
        %362 = vmatpush.bf16.msra.mxu0 0
        %363 = vmatpush.bf16.msra.mxu0 0
        %364 = vmatpush.bf16.msra.mxu0 0
        %365 = vmatpush.bf16.msra.mxu0 %v287
        %366 = vmatmul.bf16.gmra.mxu0 %v271
        %v367 = vpop.f32.mrf.mxu0
        %v368 = vadd.f32 0.0, %v367
        %v369 = vpop.f32.mrf.mxu0
        %v370 = vadd.f32 0.0, %v369
        %371 = vmatmul.bf16.gmra.mxu0 %v274
        %v372 = vpop.f32.mrf.mxu0
        %v373 = vadd.f32 0.0, %v372
        %v374 = vpop.f32.mrf.mxu0
        %v375 = vadd.f32 0.0, %v374
        %376 = vdwg.mxu0
        %377 = vmatpush.bf16.msra.mxu0 0
        %378 = vmatpush.bf16.msra.mxu0 0
        %379 = vmatpush.bf16.msra.mxu0 0
        %380 = vmatpush.bf16.msra.mxu0 0
        %381 = vmatpush.bf16.msra.mxu0 0
        %382 = vmatpush.bf16.msra.mxu0 0
        %383 = vmatpush.bf16.msra.mxu0 0
        %384 = vmatpush.bf16.msra.mxu0 %v290
        %385 = vmatmul.bf16.gmra.mxu0 %v271
        %v386 = vpop.f32.mrf.mxu0
        %v387 = vadd.f32 0.0, %v386
        %v388 = vpop.f32.mrf.mxu0
        %v389 = vadd.f32 0.0, %v388
        %390 = vmatmul.bf16.gmra.mxu0 %v274
        %v391 = vpop.f32.mrf.mxu0
        %v392 = vadd.f32 0.0, %v391
        %v393 = vpop.f32.mrf.mxu0
        %v394 = vadd.f32 0.0, %v393
        %395 = vdwg.mxu0
        %396 = vmatpush.bf16.msra.mxu0 0
        %397 = vmatpush.bf16.msra.mxu0 0
        %398 = vmatpush.bf16.msra.mxu0 0
        %399 = vmatpush.bf16.msra.mxu0 0
        %400 = vmatpush.bf16.msra.mxu0 0
        %401 = vmatpush.bf16.msra.mxu0 0
        %402 = vmatpush.bf16.msra.mxu0 0
        %403 = vmatpush.bf16.msra.mxu0 %v293
        %404 = vmatmul.bf16.gmra.mxu0 %v271
        %v405 = vpop.f32.mrf.mxu0
        %v406 = vadd.f32 0.0, %v405
        %v407 = vpop.f32.mrf.mxu0
        %v408 = vadd.f32 0.0, %v407
        %409 = vmatmul.bf16.gmra.mxu0 %v274
        %v410 = vpop.f32.mrf.mxu0
        %v411 = vadd.f32 0.0, %v410
        %v412 = vpop.f32.mrf.mxu0
        %v413 = vadd.f32 0.0, %v412
        %414 = vdwg.mxu0
        %415 = vmatpush.bf16.msra.mxu0 0
        %416 = vmatpush.bf16.msra.mxu0 0
        %417 = vmatpush.bf16.msra.mxu0 0
        %418 = vmatpush.bf16.msra.mxu0 0
        %419 = vmatpush.bf16.msra.mxu0 0
        %420 = vmatpush.bf16.msra.mxu0 0
        %421 = vmatpush.bf16.msra.mxu0 0
        %422 = vmatpush.bf16.msra.mxu0 %v296
        %423 = vmatmul.bf16.gmra.mxu0 %v271
        %v424 = vpop.f32.mrf.mxu0
        %v425 = vadd.f32 0.0, %v424
        %v426 = vpop.f32.mrf.mxu0
        %v427 = vadd.f32 0.0, %v426
        %428 = vmatmul.bf16.gmra.mxu0 %v274
        %v429 = vpop.f32.mrf.mxu0
        %v430 = vadd.f32 0.0, %v429
        %v431 = vpop.f32.mrf.mxu0
        %v432 = vadd.f32 0.0, %v431
        %433 = vdwg.mxu0
        %434 = vmatpush.bf16.msra.mxu0 0
        %435 = vmatpush.bf16.msra.mxu0 0
        %436 = vmatpush.bf16.msra.mxu0 0
        %437 = vmatpush.bf16.msra.mxu0 0
        %438 = vmatpush.bf16.msra.mxu0 0
        %439 = vmatpush.bf16.msra.mxu0 0
        %440 = vmatpush.bf16.msra.mxu0 0
        %441 = vmatpush.bf16.msra.mxu0 %v299
        %442 = vmatmul.bf16.gmra.mxu0 %v271
        %v443 = vpop.f32.mrf.mxu0
        %v444 = vadd.f32 0.0, %v443
        %v445 = vpop.f32.mrf.mxu0
        %v446 = vadd.f32 0.0, %v445
        %447 = vmatmul.bf16.gmra.mxu0 %v274
        %v448 = vpop.f32.mrf.mxu0
        %v449 = vadd.f32 0.0, %v448
        %v450 = vpop.f32.mrf.mxu0
        %v451 = vadd.f32 0.0, %v450
        %452 = vdwg.mxu0
        %454 = vset.pattern.permute.xlu0 0
        %455 = vperm.xlu0 %454, %v251
        %v456 = vpop.permute.xlu0 %455
        %459 = vset.pattern.permute.xlu0 0
        %460 = vperm.xlu0 %459, %v252
        %v461 = vpop.permute.xlu0 %460
        %464 = vset.pattern.permute.xlu0 0
        %465 = vperm.xlu0 %464, %v253
        %v466 = vpop.permute.xlu0 %465
        %469 = vset.pattern.permute.xlu0 0
        %470 = vperm.xlu0 %469, %v254
        %v471 = vpop.permute.xlu0 %470
        %v473 = vadd.f32 %v456, %v311
        %v474 = vadd.f32 %v456, %v330
        %v475 = vadd.f32 %v456, %v349
        %v476 = vadd.f32 %v456, %v368
        %v477 = vadd.f32 %v456, %v387
        %v478 = vadd.f32 %v456, %v406
        %v479 = vadd.f32 %v456, %v425
        %v480 = vadd.f32 %v456, %v444
        %v481 = vadd.f32 %v461, %v313
        %v482 = vadd.f32 %v461, %v332
        %v483 = vadd.f32 %v461, %v351
        %v484 = vadd.f32 %v461, %v370
        %v485 = vadd.f32 %v461, %v389
        %v486 = vadd.f32 %v461, %v408
        %v487 = vadd.f32 %v461, %v427
        %v488 = vadd.f32 %v461, %v446
        %v489 = vadd.f32 %v466, %v316
        %v490 = vadd.f32 %v466, %v335
        %v491 = vadd.f32 %v466, %v354
        %v492 = vadd.f32 %v466, %v373
        %v493 = vadd.f32 %v466, %v392
        %v494 = vadd.f32 %v466, %v411
        %v495 = vadd.f32 %v466, %v430
        %v496 = vadd.f32 %v466, %v449
        %v497 = vadd.f32 %v471, %v318
        %v498 = vadd.f32 %v471, %v337
        %v499 = vadd.f32 %v471, %v356
        %v500 = vadd.f32 %v471, %v375
        %v501 = vadd.f32 %v471, %v394
        %v502 = vadd.f32 %v471, %v413
        %v503 = vadd.f32 %v471, %v432
        %v504 = vadd.f32 %v471, %v451
        %v505 = vtanh.pop %v473
        %v506 = vtanh.pop %v474
        %v507 = vtanh.pop %v475
        %v508 = vtanh.pop %v476
        %v509 = vtanh.pop %v477
        %v510 = vtanh.pop %v478
        %v511 = vtanh.pop %v479
        %v512 = vtanh.pop %v480
        %v513 = vtanh.pop %v481
        %v514 = vtanh.pop %v482
        %v515 = vtanh.pop %v483
        %v516 = vtanh.pop %v484
        %v517 = vtanh.pop %v485
        %v518 = vtanh.pop %v486
        %v519 = vtanh.pop %v487
        %v520 = vtanh.pop %v488
        %v521 = vtanh.pop %v489
        %v522 = vtanh.pop %v490
        %v523 = vtanh.pop %v491
        %v524 = vtanh.pop %v492
        %v525 = vtanh.pop %v493
        %v526 = vtanh.pop %v494
        %v527 = vtanh.pop %v495
        %v528 = vtanh.pop %v496
        %v529 = vtanh.pop %v497
        %v530 = vtanh.pop %v498
        %v531 = vtanh.pop %v499
        %v532 = vtanh.pop %v500
        %v533 = vtanh.pop %v501
        %v534 = vtanh.pop %v502
        %v535 = vtanh.pop %v503
        %v536 = vtanh.pop %v504
        %v537 = vpack.c.bf16 %v513, %v505
        %v538 = vpack.c.bf16 %v514, %v506
        %v539 = vpack.c.bf16 %v515, %v507
        %v540 = vpack.c.bf16 %v516, %v508
        %v541 = vpack.c.bf16 %v517, %v509
        %v542 = vpack.c.bf16 %v518, %v510
        %v543 = vpack.c.bf16 %v519, %v511
        %v544 = vpack.c.bf16 %v520, %v512
        %v545 = vpack.c.bf16 %v529, %v521
        %v546 = vpack.c.bf16 %v530, %v522
        %v547 = vpack.c.bf16 %v531, %v523
        %v548 = vpack.c.bf16 %v532, %v524
        %v549 = vpack.c.bf16 %v533, %v525
        %v550 = vpack.c.bf16 %v534, %v526
        %v551 = vpack.c.bf16 %v535, %v527
        %v552 = vpack.c.bf16 %v536, %v528
        %v553 = vld [vmem:[%s2 + $0x48] sm:$0xff]
        %v554 = vld [vmem:[%s2 + $0x50] sm:$0xff]
        %v555 = vld [vmem:[%s2 + $0x58] sm:$0xff]
        %v556 = vld [vmem:[%s2 + $0x60] sm:$0xff]
        %558 = vset.pattern.permute.xlu0 0
        %559 = vperm.xlu0 %558, %v553
        %v560 = vpop.permute.xlu0 %559
        %563 = vset.pattern.permute.xlu0 0
        %564 = vperm.xlu0 %563, %v554
        %v565 = vpop.permute.xlu0 %564
        %568 = vset.pattern.permute.xlu0 0
        %569 = vperm.xlu0 %568, %v555
        %v570 = vpop.permute.xlu0 %569
        %573 = vset.pattern.permute.xlu0 0
        %574 = vperm.xlu0 %573, %v556
        %v575 = vpop.permute.xlu0 %574
        %v577 = vmul.f32 %v560, %v505
        %v578 = vmul.f32 %v560, %v506
        %v579 = vmul.f32 %v560, %v507
        %v580 = vmul.f32 %v560, %v508
        %v581 = vmul.f32 %v560, %v509
        %v582 = vmul.f32 %v560, %v510
        %v583 = vmul.f32 %v560, %v511
        %v584 = vmul.f32 %v560, %v512
        %v585 = vmul.f32 %v565, %v513
        %v586 = vmul.f32 %v565, %v514
        %v587 = vmul.f32 %v565, %v515
        %v588 = vmul.f32 %v565, %v516
        %v589 = vmul.f32 %v565, %v517
        %v590 = vmul.f32 %v565, %v518
        %v591 = vmul.f32 %v565, %v519
        %v592 = vmul.f32 %v565, %v520
        %v593 = vmul.f32 %v570, %v521
        %v594 = vmul.f32 %v570, %v522
        %v595 = vmul.f32 %v570, %v523
        %v596 = vmul.f32 %v570, %v524
        %v597 = vmul.f32 %v570, %v525
        %v598 = vmul.f32 %v570, %v526
        %v599 = vmul.f32 %v570, %v527
        %v600 = vmul.f32 %v570, %v528
        %v601 = vmul.f32 %v575, %v529
        %v602 = vmul.f32 %v575, %v530
        %v603 = vmul.f32 %v575, %v531
        %v604 = vmul.f32 %v575, %v532
        %v605 = vmul.f32 %v575, %v533
        %v606 = vmul.f32 %v575, %v534
        %v607 = vmul.f32 %v575, %v535
        %v608 = vmul.f32 %v575, %v536
        %v609 = vadd.f32 %v577, %v585
        %v610 = vadd.f32 %v609, %v593
        %v611 = vadd.f32 %v610, %v601
        %v612 = vrot.slane %v611, 4
        %v613 = vadd.f32 %v611, %v612
        %v614 = vrot.slane %v613, 2
        %v615 = vadd.f32 %v613, %v614
        %v616 = vrot.slane %v615, 1
        %v617 = vadd.f32 %v615, %v616
        %v618 = vadd.f32 %v578, %v586
        %v619 = vadd.f32 %v618, %v594
        %v620 = vadd.f32 %v619, %v602
        %v621 = vrot.slane %v620, 4
        %v622 = vadd.f32 %v620, %v621
        %v623 = vrot.slane %v622, 2
        %v624 = vadd.f32 %v622, %v623
        %v625 = vrot.slane %v624, 1
        %v626 = vadd.f32 %v624, %v625
        %v627 = vadd.f32 %v579, %v587
        %v628 = vadd.f32 %v627, %v595
        %v629 = vadd.f32 %v628, %v603
        %v630 = vrot.slane %v629, 4
        %v631 = vadd.f32 %v629, %v630
        %v632 = vrot.slane %v631, 2
        %v633 = vadd.f32 %v631, %v632
        %v634 = vrot.slane %v633, 1
        %v635 = vadd.f32 %v633, %v634
        %v636 = vadd.f32 %v580, %v588
        %v637 = vadd.f32 %v636, %v596
        %v638 = vadd.f32 %v637, %v604
        %v639 = vrot.slane %v638, 4
        %v640 = vadd.f32 %v638, %v639
        %v641 = vrot.slane %v640, 2
        %v642 = vadd.f32 %v640, %v641
        %v643 = vrot.slane %v642, 1
        %v644 = vadd.f32 %v642, %v643
        %v645 = vadd.f32 %v581, %v589
        %v646 = vadd.f32 %v645, %v597
        %v647 = vadd.f32 %v646, %v605
        %v648 = vrot.slane %v647, 4
        %v649 = vadd.f32 %v647, %v648
        %v650 = vrot.slane %v649, 2
        %v651 = vadd.f32 %v649, %v650
        %v652 = vrot.slane %v651, 1
        %v653 = vadd.f32 %v651, %v652
        %v654 = vadd.f32 %v582, %v590
        %v655 = vadd.f32 %v654, %v598
        %v656 = vadd.f32 %v655, %v606
        %v657 = vrot.slane %v656, 4
        %v658 = vadd.f32 %v656, %v657
        %v659 = vrot.slane %v658, 2
        %v660 = vadd.f32 %v658, %v659
        %v661 = vrot.slane %v660, 1
        %v662 = vadd.f32 %v660, %v661
        %v663 = vadd.f32 %v583, %v591
        %v664 = vadd.f32 %v663, %v599
        %v665 = vadd.f32 %v664, %v607
        %v666 = vrot.slane %v665, 4
        %v667 = vadd.f32 %v665, %v666
        %v668 = vrot.slane %v667, 2
        %v669 = vadd.f32 %v667, %v668
        %v670 = vrot.slane %v669, 1
        %v671 = vadd.f32 %v669, %v670
        %v672 = vadd.f32 %v584, %v592
        %v673 = vadd.f32 %v672, %v600
        %v674 = vadd.f32 %v673, %v608
        %v675 = vrot.slane %v674, 4
        %v676 = vadd.f32 %v674, %v675
        %v677 = vrot.slane %v676, 2
        %v678 = vadd.f32 %v676, %v677
        %v679 = vrot.slane %v678, 1
        %v680 = vadd.f32 %v678, %v679
        %v681 = vadd.f32 %v208, %v617
        %v682 = vadd.f32 %v214, %v626
        %v683 = vadd.f32 %v220, %v635
        %v684 = vadd.f32 %v226, %v644
        %v685 = vadd.f32 %v232, %v653
        %v686 = vadd.f32 %v238, %v662
        %v687 = vadd.f32 %v244, %v671
        %v688 = vadd.f32 %v250, %v680
        %v689 = vld [vmem:[%s2 + $0x20] sm:$0xff]
        %v690 = vld [vmem:[%s2 + $0x28] sm:$0xff]
        %v691 = vld [vmem:[%s2 + $0x30] sm:$0xff]
        %v692 = vld [vmem:[%s2 + $0x38] sm:$0xff]
        %v693 = vld [vmem:[%s1 + $0x10] sm:$0xf]
        %v694 = vld [vmem:[%s1 + $0x14] sm:$0xf]
        %v695 = vld [vmem:[%s1 + $0x18] sm:$0xf]
        %v696 = vld [vmem:[%s1 + $0x1c] sm:$0xf]
        %v701 = vunpack.c.l.b16 %v693
        %v702 = vunpack.c.l.b16 %v694
        %v703 = vunpack.c.l.b16 %v695
        %v704 = vunpack.c.l.b16 %v696
        %v705 = vpack.c.b16 %v702, %v701
        %v706 = vpack.c.b16 %v704, %v703
        %v708 = vsel %vm269, %v705, 0
        %v711 = vsel %vm269, %v706, 0
        %713 = vmatpush.bf16.msra.mxu0 0
        %714 = vmatpush.bf16.msra.mxu0 0
        %715 = vmatpush.bf16.msra.mxu0 0
        %716 = vmatpush.bf16.msra.mxu0 0
        %717 = vmatpush.bf16.msra.mxu0 0
        %718 = vmatpush.bf16.msra.mxu0 0
        %719 = vmatpush.bf16.msra.mxu0 0
        %720 = vmatpush.bf16.msra.mxu0 %v278
        %721 = vmatmul.bf16.gmra.mxu0 %v708
        %v722 = vpop.f32.mrf.mxu0
        %v723 = vadd.f32 0.0, %v722
        %v724 = vpop.f32.mrf.mxu0
        %v725 = vadd.f32 0.0, %v724
        %726 = vmatmul.bf16.gmra.mxu0 %v711
        %v727 = vpop.f32.mrf.mxu0
        %v728 = vadd.f32 0.0, %v727
        %v729 = vpop.f32.mrf.mxu0
        %v730 = vadd.f32 0.0, %v729
        %731 = vdwg.mxu0
        %732 = vmatpush.bf16.msra.mxu0 0
        %733 = vmatpush.bf16.msra.mxu0 0
        %734 = vmatpush.bf16.msra.mxu0 0
        %735 = vmatpush.bf16.msra.mxu0 0
        %736 = vmatpush.bf16.msra.mxu0 0
        %737 = vmatpush.bf16.msra.mxu0 0
        %738 = vmatpush.bf16.msra.mxu0 0
        %739 = vmatpush.bf16.msra.mxu0 %v281
        %740 = vmatmul.bf16.gmra.mxu0 %v708
        %v741 = vpop.f32.mrf.mxu0
        %v742 = vadd.f32 0.0, %v741
        %v743 = vpop.f32.mrf.mxu0
        %v744 = vadd.f32 0.0, %v743
        %745 = vmatmul.bf16.gmra.mxu0 %v711
        %v746 = vpop.f32.mrf.mxu0
        %v747 = vadd.f32 0.0, %v746
        %v748 = vpop.f32.mrf.mxu0
        %v749 = vadd.f32 0.0, %v748
        %750 = vdwg.mxu0
        %751 = vmatpush.bf16.msra.mxu0 0
        %752 = vmatpush.bf16.msra.mxu0 0
        %753 = vmatpush.bf16.msra.mxu0 0
        %754 = vmatpush.bf16.msra.mxu0 0
        %755 = vmatpush.bf16.msra.mxu0 0
        %756 = vmatpush.bf16.msra.mxu0 0
        %757 = vmatpush.bf16.msra.mxu0 0
        %758 = vmatpush.bf16.msra.mxu0 %v284
        %759 = vmatmul.bf16.gmra.mxu0 %v708
        %v760 = vpop.f32.mrf.mxu0
        %v761 = vadd.f32 0.0, %v760
        %v762 = vpop.f32.mrf.mxu0
        %v763 = vadd.f32 0.0, %v762
        %764 = vmatmul.bf16.gmra.mxu0 %v711
        %v765 = vpop.f32.mrf.mxu0
        %v766 = vadd.f32 0.0, %v765
        %v767 = vpop.f32.mrf.mxu0
        %v768 = vadd.f32 0.0, %v767
        %769 = vdwg.mxu0
        %770 = vmatpush.bf16.msra.mxu0 0
        %771 = vmatpush.bf16.msra.mxu0 0
        %772 = vmatpush.bf16.msra.mxu0 0
        %773 = vmatpush.bf16.msra.mxu0 0
        %774 = vmatpush.bf16.msra.mxu0 0
        %775 = vmatpush.bf16.msra.mxu0 0
        %776 = vmatpush.bf16.msra.mxu0 0
        %777 = vmatpush.bf16.msra.mxu0 %v287
        %778 = vmatmul.bf16.gmra.mxu0 %v708
        %v779 = vpop.f32.mrf.mxu0
        %v780 = vadd.f32 0.0, %v779
        %v781 = vpop.f32.mrf.mxu0
        %v782 = vadd.f32 0.0, %v781
        %783 = vmatmul.bf16.gmra.mxu0 %v711
        %v784 = vpop.f32.mrf.mxu0
        %v785 = vadd.f32 0.0, %v784
        %v786 = vpop.f32.mrf.mxu0
        %v787 = vadd.f32 0.0, %v786
        %788 = vdwg.mxu0
        %789 = vmatpush.bf16.msra.mxu0 0
        %790 = vmatpush.bf16.msra.mxu0 0
        %791 = vmatpush.bf16.msra.mxu0 0
        %792 = vmatpush.bf16.msra.mxu0 0
        %793 = vmatpush.bf16.msra.mxu0 0
        %794 = vmatpush.bf16.msra.mxu0 0
        %795 = vmatpush.bf16.msra.mxu0 0
        %796 = vmatpush.bf16.msra.mxu0 %v290
        %797 = vmatmul.bf16.gmra.mxu0 %v708
        %v798 = vpop.f32.mrf.mxu0
        %v799 = vadd.f32 0.0, %v798
        %v800 = vpop.f32.mrf.mxu0
        %v801 = vadd.f32 0.0, %v800
        %802 = vmatmul.bf16.gmra.mxu0 %v711
        %v803 = vpop.f32.mrf.mxu0
        %v804 = vadd.f32 0.0, %v803
        %v805 = vpop.f32.mrf.mxu0
        %v806 = vadd.f32 0.0, %v805
        %807 = vdwg.mxu0
        %808 = vmatpush.bf16.msra.mxu0 0
        %809 = vmatpush.bf16.msra.mxu0 0
        %810 = vmatpush.bf16.msra.mxu0 0
        %811 = vmatpush.bf16.msra.mxu0 0
        %812 = vmatpush.bf16.msra.mxu0 0
        %813 = vmatpush.bf16.msra.mxu0 0
        %814 = vmatpush.bf16.msra.mxu0 0
        %815 = vmatpush.bf16.msra.mxu0 %v293
        %816 = vmatmul.bf16.gmra.mxu0 %v708
        %v817 = vpop.f32.mrf.mxu0
        %v818 = vadd.f32 0.0, %v817
        %v819 = vpop.f32.mrf.mxu0
        %v820 = vadd.f32 0.0, %v819
        %821 = vmatmul.bf16.gmra.mxu0 %v711
        %v822 = vpop.f32.mrf.mxu0
        %v823 = vadd.f32 0.0, %v822
        %v824 = vpop.f32.mrf.mxu0
        %v825 = vadd.f32 0.0, %v824
        %826 = vdwg.mxu0
        %827 = vmatpush.bf16.msra.mxu0 0
        %828 = vmatpush.bf16.msra.mxu0 0
        %829 = vmatpush.bf16.msra.mxu0 0
        %830 = vmatpush.bf16.msra.mxu0 0
        %831 = vmatpush.bf16.msra.mxu0 0
        %832 = vmatpush.bf16.msra.mxu0 0
        %833 = vmatpush.bf16.msra.mxu0 0
        %834 = vmatpush.bf16.msra.mxu0 %v296
        %835 = vmatmul.bf16.gmra.mxu0 %v708
        %v836 = vpop.f32.mrf.mxu0
        %v837 = vadd.f32 0.0, %v836
        %v838 = vpop.f32.mrf.mxu0
        %v839 = vadd.f32 0.0, %v838
        %840 = vmatmul.bf16.gmra.mxu0 %v711
        %v841 = vpop.f32.mrf.mxu0
        %v842 = vadd.f32 0.0, %v841
        %v843 = vpop.f32.mrf.mxu0
        %v844 = vadd.f32 0.0, %v843
        %845 = vdwg.mxu0
        %846 = vmatpush.bf16.msra.mxu0 0
        %847 = vmatpush.bf16.msra.mxu0 0
        %848 = vmatpush.bf16.msra.mxu0 0
        %849 = vmatpush.bf16.msra.mxu0 0
        %850 = vmatpush.bf16.msra.mxu0 0
        %851 = vmatpush.bf16.msra.mxu0 0
        %852 = vmatpush.bf16.msra.mxu0 0
        %853 = vmatpush.bf16.msra.mxu0 %v299
        %854 = vmatmul.bf16.gmra.mxu0 %v708
        %v855 = vpop.f32.mrf.mxu0
        %v856 = vadd.f32 0.0, %v855
        %v857 = vpop.f32.mrf.mxu0
        %v858 = vadd.f32 0.0, %v857
        %859 = vmatmul.bf16.gmra.mxu0 %v711
        %v860 = vpop.f32.mrf.mxu0
        %v861 = vadd.f32 0.0, %v860
        %v862 = vpop.f32.mrf.mxu0
        %v863 = vadd.f32 0.0, %v862
        %864 = vdwg.mxu0
        %866 = vset.pattern.permute.xlu0 0
        %867 = vperm.xlu0 %866, %v689
        %v868 = vpop.permute.xlu0 %867
        %871 = vset.pattern.permute.xlu0 0
        %872 = vperm.xlu0 %871, %v690
        %v873 = vpop.permute.xlu0 %872
        %876 = vset.pattern.permute.xlu0 0
        %877 = vperm.xlu0 %876, %v691
        %v878 = vpop.permute.xlu0 %877
        %881 = vset.pattern.permute.xlu0 0
        %882 = vperm.xlu0 %881, %v692
        %v883 = vpop.permute.xlu0 %882
        %v885 = vadd.f32 %v868, %v723
        %v886 = vadd.f32 %v868, %v742
        %v887 = vadd.f32 %v868, %v761
        %v888 = vadd.f32 %v868, %v780
        %v889 = vadd.f32 %v868, %v799
        %v890 = vadd.f32 %v868, %v818
        %v891 = vadd.f32 %v868, %v837
        %v892 = vadd.f32 %v868, %v856
        %v893 = vadd.f32 %v873, %v725
        %v894 = vadd.f32 %v873, %v744
        %v895 = vadd.f32 %v873, %v763
        %v896 = vadd.f32 %v873, %v782
        %v897 = vadd.f32 %v873, %v801
        %v898 = vadd.f32 %v873, %v820
        %v899 = vadd.f32 %v873, %v839
        %v900 = vadd.f32 %v873, %v858
        %v901 = vadd.f32 %v878, %v728
        %v902 = vadd.f32 %v878, %v747
        %v903 = vadd.f32 %v878, %v766
        %v904 = vadd.f32 %v878, %v785
        %v905 = vadd.f32 %v878, %v804
        %v906 = vadd.f32 %v878, %v823
        %v907 = vadd.f32 %v878, %v842
        %v908 = vadd.f32 %v878, %v861
        %v909 = vadd.f32 %v883, %v730
        %v910 = vadd.f32 %v883, %v749
        %v911 = vadd.f32 %v883, %v768
        %v912 = vadd.f32 %v883, %v787
        %v913 = vadd.f32 %v883, %v806
        %v914 = vadd.f32 %v883, %v825
        %v915 = vadd.f32 %v883, %v844
        %v916 = vadd.f32 %v883, %v863
        %v917 = vld [vmem:[%s1 + $0x20] sm:$0xf]
        %v918 = vld [vmem:[%s1 + $0x24] sm:$0xf]
        %v919 = vld [vmem:[%s1 + $0x28] sm:$0xf]
        %v920 = vld [vmem:[%s1 + $0x2c] sm:$0xf]
        %v925 = vunpack.c.l.b16 %v917
        %v926 = vunpack.c.l.b16 %v918
        %v927 = vunpack.c.l.b16 %v919
        %v928 = vunpack.c.l.b16 %v920
        %v929 = vpack.c.b16 %v926, %v925
        %v930 = vpack.c.b16 %v928, %v927
        %vm931 = vcmask 261120
        %v933 = vsel %vm931, %v929, 0
        %v936 = vsel %vm931, %v930, 0
        %938 = vmatpush.bf16.msra.mxu0 0
        %939 = vmatpush.bf16.msra.mxu0 0
        %940 = vmatpush.bf16.msra.mxu0 0
        %941 = vmatpush.bf16.msra.mxu0 0
        %942 = vmatpush.bf16.msra.mxu0 0
        %943 = vmatpush.bf16.msra.mxu0 0
        %944 = vmatpush.bf16.msra.mxu0 %v545
        %945 = vmatpush.bf16.msra.mxu0 %v537
        %946 = vmatmul.bf16.gmra.mxu0 %v933
        %v947 = vpop.f32.mrf.mxu0
        %v948 = vadd.f32 0.0, %v947
        %v949 = vpop.f32.mrf.mxu0
        %v950 = vadd.f32 0.0, %v949
        %951 = vmatmul.bf16.gmra.mxu0 %v936
        %v952 = vpop.f32.mrf.mxu0
        %v953 = vadd.f32 0.0, %v952
        %v954 = vpop.f32.mrf.mxu0
        %v955 = vadd.f32 0.0, %v954
        %956 = vdwg.mxu0
        %957 = vmatpush.bf16.msra.mxu0 0
        %958 = vmatpush.bf16.msra.mxu0 0
        %959 = vmatpush.bf16.msra.mxu0 0
        %960 = vmatpush.bf16.msra.mxu0 0
        %961 = vmatpush.bf16.msra.mxu0 0
        %962 = vmatpush.bf16.msra.mxu0 0
        %963 = vmatpush.bf16.msra.mxu0 %v546
        %964 = vmatpush.bf16.msra.mxu0 %v538
        %965 = vmatmul.bf16.gmra.mxu0 %v933
        %v966 = vpop.f32.mrf.mxu0
        %v967 = vadd.f32 0.0, %v966
        %v968 = vpop.f32.mrf.mxu0
        %v969 = vadd.f32 0.0, %v968
        %970 = vmatmul.bf16.gmra.mxu0 %v936
        %v971 = vpop.f32.mrf.mxu0
        %v972 = vadd.f32 0.0, %v971
        %v973 = vpop.f32.mrf.mxu0
        %v974 = vadd.f32 0.0, %v973
        %975 = vdwg.mxu0
        %976 = vmatpush.bf16.msra.mxu0 0
        %977 = vmatpush.bf16.msra.mxu0 0
        %978 = vmatpush.bf16.msra.mxu0 0
        %979 = vmatpush.bf16.msra.mxu0 0
        %980 = vmatpush.bf16.msra.mxu0 0
        %981 = vmatpush.bf16.msra.mxu0 0
        %982 = vmatpush.bf16.msra.mxu0 %v547
        %983 = vmatpush.bf16.msra.mxu0 %v539
        %984 = vmatmul.bf16.gmra.mxu0 %v933
        %v985 = vpop.f32.mrf.mxu0
        %v986 = vadd.f32 0.0, %v985
        %v987 = vpop.f32.mrf.mxu0
        %v988 = vadd.f32 0.0, %v987
        %989 = vmatmul.bf16.gmra.mxu0 %v936
        %v990 = vpop.f32.mrf.mxu0
        %v991 = vadd.f32 0.0, %v990
        %v992 = vpop.f32.mrf.mxu0
        %v993 = vadd.f32 0.0, %v992
        %994 = vdwg.mxu0
        %995 = vmatpush.bf16.msra.mxu0 0
        %996 = vmatpush.bf16.msra.mxu0 0
        %997 = vmatpush.bf16.msra.mxu0 0
        %998 = vmatpush.bf16.msra.mxu0 0
        %999 = vmatpush.bf16.msra.mxu0 0
        %1000 = vmatpush.bf16.msra.mxu0 0
        %1001 = vmatpush.bf16.msra.mxu0 %v548
        %1002 = vmatpush.bf16.msra.mxu0 %v540
        %1003 = vmatmul.bf16.gmra.mxu0 %v933
        %v1004 = vpop.f32.mrf.mxu0
        %v1005 = vadd.f32 0.0, %v1004
        %v1006 = vpop.f32.mrf.mxu0
        %v1007 = vadd.f32 0.0, %v1006
        %1008 = vmatmul.bf16.gmra.mxu0 %v936
        %v1009 = vpop.f32.mrf.mxu0
        %v1010 = vadd.f32 0.0, %v1009
        %v1011 = vpop.f32.mrf.mxu0
        %v1012 = vadd.f32 0.0, %v1011
        %1013 = vdwg.mxu0
        %1014 = vmatpush.bf16.msra.mxu0 0
        %1015 = vmatpush.bf16.msra.mxu0 0
        %1016 = vmatpush.bf16.msra.mxu0 0
        %1017 = vmatpush.bf16.msra.mxu0 0
        %1018 = vmatpush.bf16.msra.mxu0 0
        %1019 = vmatpush.bf16.msra.mxu0 0
        %1020 = vmatpush.bf16.msra.mxu0 %v549
        %1021 = vmatpush.bf16.msra.mxu0 %v541
        %1022 = vmatmul.bf16.gmra.mxu0 %v933
        %v1023 = vpop.f32.mrf.mxu0
        %v1024 = vadd.f32 0.0, %v1023
        %v1025 = vpop.f32.mrf.mxu0
        %v1026 = vadd.f32 0.0, %v1025
        %1027 = vmatmul.bf16.gmra.mxu0 %v936
        %v1028 = vpop.f32.mrf.mxu0
        %v1029 = vadd.f32 0.0, %v1028
        %v1030 = vpop.f32.mrf.mxu0
        %v1031 = vadd.f32 0.0, %v1030
        %1032 = vdwg.mxu0
        %1033 = vmatpush.bf16.msra.mxu0 0
        %1034 = vmatpush.bf16.msra.mxu0 0
        %1035 = vmatpush.bf16.msra.mxu0 0
        %1036 = vmatpush.bf16.msra.mxu0 0
        %1037 = vmatpush.bf16.msra.mxu0 0
        %1038 = vmatpush.bf16.msra.mxu0 0
        %1039 = vmatpush.bf16.msra.mxu0 %v550
        %1040 = vmatpush.bf16.msra.mxu0 %v542
        %1041 = vmatmul.bf16.gmra.mxu0 %v933
        %v1042 = vpop.f32.mrf.mxu0
        %v1043 = vadd.f32 0.0, %v1042
        %v1044 = vpop.f32.mrf.mxu0
        %v1045 = vadd.f32 0.0, %v1044
        %1046 = vmatmul.bf16.gmra.mxu0 %v936
        %v1047 = vpop.f32.mrf.mxu0
        %v1048 = vadd.f32 0.0, %v1047
        %v1049 = vpop.f32.mrf.mxu0
        %v1050 = vadd.f32 0.0, %v1049
        %1051 = vdwg.mxu0
        %1052 = vmatpush.bf16.msra.mxu0 0
        %1053 = vmatpush.bf16.msra.mxu0 0
        %1054 = vmatpush.bf16.msra.mxu0 0
        %1055 = vmatpush.bf16.msra.mxu0 0
        %1056 = vmatpush.bf16.msra.mxu0 0
        %1057 = vmatpush.bf16.msra.mxu0 0
        %1058 = vmatpush.bf16.msra.mxu0 %v551
        %1059 = vmatpush.bf16.msra.mxu0 %v543
        %1060 = vmatmul.bf16.gmra.mxu0 %v933
        %v1061 = vpop.f32.mrf.mxu0
        %v1062 = vadd.f32 0.0, %v1061
        %v1063 = vpop.f32.mrf.mxu0
        %v1064 = vadd.f32 0.0, %v1063
        %1065 = vmatmul.bf16.gmra.mxu0 %v936
        %v1066 = vpop.f32.mrf.mxu0
        %v1067 = vadd.f32 0.0, %v1066
        %v1068 = vpop.f32.mrf.mxu0
        %v1069 = vadd.f32 0.0, %v1068
        %1070 = vdwg.mxu0
        %1071 = vmatpush.bf16.msra.mxu0 0
        %1072 = vmatpush.bf16.msra.mxu0 0
        %1073 = vmatpush.bf16.msra.mxu0 0
        %1074 = vmatpush.bf16.msra.mxu0 0
        %1075 = vmatpush.bf16.msra.mxu0 0
        %1076 = vmatpush.bf16.msra.mxu0 0
        %1077 = vmatpush.bf16.msra.mxu0 %v552
        %1078 = vmatpush.bf16.msra.mxu0 %v544
        %1079 = vmatmul.bf16.gmra.mxu0 %v933
        %v1080 = vpop.f32.mrf.mxu0
        %v1081 = vadd.f32 0.0, %v1080
        %v1082 = vpop.f32.mrf.mxu0
        %v1083 = vadd.f32 0.0, %v1082
        %1084 = vmatmul.bf16.gmra.mxu0 %v936
        %v1085 = vpop.f32.mrf.mxu0
        %v1086 = vadd.f32 0.0, %v1085
        %v1087 = vpop.f32.mrf.mxu0
        %v1088 = vadd.f32 0.0, %v1087
        %1089 = vdwg.mxu0
        %v1090 = vadd.f32 %v885, %v948
        %v1091 = vadd.f32 %v886, %v967
        %v1092 = vadd.f32 %v887, %v986
        %v1093 = vadd.f32 %v888, %v1005
        %v1094 = vadd.f32 %v889, %v1024
        %v1095 = vadd.f32 %v890, %v1043
        %v1096 = vadd.f32 %v891, %v1062
        %v1097 = vadd.f32 %v892, %v1081
        %v1098 = vadd.f32 %v893, %v950
        %v1099 = vadd.f32 %v894, %v969
        %v1100 = vadd.f32 %v895, %v988
        %v1101 = vadd.f32 %v896, %v1007
        %v1102 = vadd.f32 %v897, %v1026
        %v1103 = vadd.f32 %v898, %v1045
        %v1104 = vadd.f32 %v899, %v1064
        %v1105 = vadd.f32 %v900, %v1083
        %v1106 = vadd.f32 %v901, %v953
        %v1107 = vadd.f32 %v902, %v972
        %v1108 = vadd.f32 %v903, %v991
        %v1109 = vadd.f32 %v904, %v1010
        %v1110 = vadd.f32 %v905, %v1029
        %v1111 = vadd.f32 %v906, %v1048
        %v1112 = vadd.f32 %v907, %v1067
        %v1113 = vadd.f32 %v908, %v1086
        %v1114 = vadd.f32 %v909, %v955
        %v1115 = vadd.f32 %v910, %v974
        %v1116 = vadd.f32 %v911, %v993
        %v1117 = vadd.f32 %v912, %v1012
        %v1118 = vadd.f32 %v913, %v1031
        %v1119 = vadd.f32 %v914, %v1050
        %v1120 = vadd.f32 %v915, %v1069
        %v1121 = vadd.f32 %v916, %v1088
        %v1122 = vtanh.pop %v1090
        %v1123 = vtanh.pop %v1091
        %v1124 = vtanh.pop %v1092
        %v1125 = vtanh.pop %v1093
        %v1126 = vtanh.pop %v1094
        %v1127 = vtanh.pop %v1095
        %v1128 = vtanh.pop %v1096
        %v1129 = vtanh.pop %v1097
        %v1130 = vtanh.pop %v1098
        %v1131 = vtanh.pop %v1099
        %v1132 = vtanh.pop %v1100
        %v1133 = vtanh.pop %v1101
        %v1134 = vtanh.pop %v1102
        %v1135 = vtanh.pop %v1103
        %v1136 = vtanh.pop %v1104
        %v1137 = vtanh.pop %v1105
        %v1138 = vtanh.pop %v1106
        %v1139 = vtanh.pop %v1107
        %v1140 = vtanh.pop %v1108
        %v1141 = vtanh.pop %v1109
        %v1142 = vtanh.pop %v1110
        %v1143 = vtanh.pop %v1111
        %v1144 = vtanh.pop %v1112
        %v1145 = vtanh.pop %v1113
        %v1146 = vtanh.pop %v1114
        %v1147 = vtanh.pop %v1115
        %v1148 = vtanh.pop %v1116
        %v1149 = vtanh.pop %v1117
        %v1150 = vtanh.pop %v1118
        %v1151 = vtanh.pop %v1119
        %v1152 = vtanh.pop %v1120
        %v1153 = vtanh.pop %v1121
        %v1154 = vld [vmem:[%s2 + $0x68] sm:$0xff]
        %v1155 = vld [vmem:[%s2 + $0x70] sm:$0xff]
        %v1156 = vld [vmem:[%s2 + $0x78] sm:$0xff]
        %v1157 = vld [vmem:[%s2 + $0x80] sm:$0xff]
        %1159 = vset.pattern.permute.xlu0 0
        %1160 = vperm.xlu0 %1159, %v1154
        %v1161 = vpop.permute.xlu0 %1160
        %1164 = vset.pattern.permute.xlu0 0
        %1165 = vperm.xlu0 %1164, %v1155
        %v1166 = vpop.permute.xlu0 %1165
        %1169 = vset.pattern.permute.xlu0 0
        %1170 = vperm.xlu0 %1169, %v1156
        %v1171 = vpop.permute.xlu0 %1170
        %1174 = vset.pattern.permute.xlu0 0
        %1175 = vperm.xlu0 %1174, %v1157
        %v1176 = vpop.permute.xlu0 %1175
        %v1178 = vmul.f32 %v1161, %v1122
        %v1179 = vmul.f32 %v1161, %v1123
        %v1180 = vmul.f32 %v1161, %v1124
        %v1181 = vmul.f32 %v1161, %v1125
        %v1182 = vmul.f32 %v1161, %v1126
        %v1183 = vmul.f32 %v1161, %v1127
        %v1184 = vmul.f32 %v1161, %v1128
        %v1185 = vmul.f32 %v1161, %v1129
        %v1186 = vmul.f32 %v1166, %v1130
        %v1187 = vmul.f32 %v1166, %v1131
        %v1188 = vmul.f32 %v1166, %v1132
        %v1189 = vmul.f32 %v1166, %v1133
        %v1190 = vmul.f32 %v1166, %v1134
        %v1191 = vmul.f32 %v1166, %v1135
        %v1192 = vmul.f32 %v1166, %v1136
        %v1193 = vmul.f32 %v1166, %v1137
        %v1194 = vmul.f32 %v1171, %v1138
        %v1195 = vmul.f32 %v1171, %v1139
        %v1196 = vmul.f32 %v1171, %v1140
        %v1197 = vmul.f32 %v1171, %v1141
        %v1198 = vmul.f32 %v1171, %v1142
        %v1199 = vmul.f32 %v1171, %v1143
        %v1200 = vmul.f32 %v1171, %v1144
        %v1201 = vmul.f32 %v1171, %v1145
        %v1202 = vmul.f32 %v1176, %v1146
        %v1203 = vmul.f32 %v1176, %v1147
        %v1204 = vmul.f32 %v1176, %v1148
        %v1205 = vmul.f32 %v1176, %v1149
        %v1206 = vmul.f32 %v1176, %v1150
        %v1207 = vmul.f32 %v1176, %v1151
        %v1208 = vmul.f32 %v1176, %v1152
        %v1209 = vmul.f32 %v1176, %v1153
        %v1210 = vadd.f32 %v1178, %v1186
        %v1211 = vadd.f32 %v1210, %v1194
        %v1212 = vadd.f32 %v1211, %v1202
        %v1213 = vrot.slane %v1212, 4
        %v1214 = vadd.f32 %v1212, %v1213
        %v1215 = vrot.slane %v1214, 2
        %v1216 = vadd.f32 %v1214, %v1215
        %v1217 = vrot.slane %v1216, 1
        %v1218 = vadd.f32 %v1216, %v1217
        %v1219 = vadd.f32 %v1179, %v1187
        %v1220 = vadd.f32 %v1219, %v1195
        %v1221 = vadd.f32 %v1220, %v1203
        %v1222 = vrot.slane %v1221, 4
        %v1223 = vadd.f32 %v1221, %v1222
        %v1224 = vrot.slane %v1223, 2
        %v1225 = vadd.f32 %v1223, %v1224
        %v1226 = vrot.slane %v1225, 1
        %v1227 = vadd.f32 %v1225, %v1226
        %v1228 = vadd.f32 %v1180, %v1188
        %v1229 = vadd.f32 %v1228, %v1196
        %v1230 = vadd.f32 %v1229, %v1204
        %v1231 = vrot.slane %v1230, 4
        %v1232 = vadd.f32 %v1230, %v1231
        %v1233 = vrot.slane %v1232, 2
        %v1234 = vadd.f32 %v1232, %v1233
        %v1235 = vrot.slane %v1234, 1
        %v1236 = vadd.f32 %v1234, %v1235
        %v1237 = vadd.f32 %v1181, %v1189
        %v1238 = vadd.f32 %v1237, %v1197
        %v1239 = vadd.f32 %v1238, %v1205
        %v1240 = vrot.slane %v1239, 4
        %v1241 = vadd.f32 %v1239, %v1240
        %v1242 = vrot.slane %v1241, 2
        %v1243 = vadd.f32 %v1241, %v1242
        %v1244 = vrot.slane %v1243, 1
        %v1245 = vadd.f32 %v1243, %v1244
        %v1246 = vadd.f32 %v1182, %v1190
        %v1247 = vadd.f32 %v1246, %v1198
        %v1248 = vadd.f32 %v1247, %v1206
        %v1249 = vrot.slane %v1248, 4
        %v1250 = vadd.f32 %v1248, %v1249
        %v1251 = vrot.slane %v1250, 2
        %v1252 = vadd.f32 %v1250, %v1251
        %v1253 = vrot.slane %v1252, 1
        %v1254 = vadd.f32 %v1252, %v1253
        %v1255 = vadd.f32 %v1183, %v1191
        %v1256 = vadd.f32 %v1255, %v1199
        %v1257 = vadd.f32 %v1256, %v1207
        %v1258 = vrot.slane %v1257, 4
        %v1259 = vadd.f32 %v1257, %v1258
        %v1260 = vrot.slane %v1259, 2
        %v1261 = vadd.f32 %v1259, %v1260
        %v1262 = vrot.slane %v1261, 1
        %v1263 = vadd.f32 %v1261, %v1262
        %v1264 = vadd.f32 %v1184, %v1192
        %v1265 = vadd.f32 %v1264, %v1200
        %v1266 = vadd.f32 %v1265, %v1208
        %v1267 = vrot.slane %v1266, 4
        %v1268 = vadd.f32 %v1266, %v1267
        %v1269 = vrot.slane %v1268, 2
        %v1270 = vadd.f32 %v1268, %v1269
        %v1271 = vrot.slane %v1270, 1
        %v1272 = vadd.f32 %v1270, %v1271
        %v1273 = vadd.f32 %v1185, %v1193
        %v1274 = vadd.f32 %v1273, %v1201
        %v1275 = vadd.f32 %v1274, %v1209
        %v1276 = vrot.slane %v1275, 4
        %v1277 = vadd.f32 %v1275, %v1276
        %v1278 = vrot.slane %v1277, 2
        %v1279 = vadd.f32 %v1277, %v1278
        %v1280 = vrot.slane %v1279, 1
        %v1281 = vadd.f32 %v1279, %v1280
        %v1282 = vadd.f32 %v681, %v1218
        %v1283 = vadd.f32 %v682, %v1227
        %v1284 = vadd.f32 %v683, %v1236
        %v1285 = vadd.f32 %v684, %v1245
        %v1286 = vadd.f32 %v685, %v1254
        %v1287 = vadd.f32 %v686, %v1263
        %v1288 = vadd.f32 %v687, %v1272
        %v1289 = vadd.f32 %v688, %v1281
        %v1290 = vld [vmem:[%s2 + $0x88] sm:$0x1]
        %1292 = vset.pattern.permute.xlu0 0
        %1293 = vperm.xlu0 %1292, %v1290
        %v1294 = vpop.permute.xlu0 %1293
        %v1296 = vadd.f32 %v1282, %v1294
        %v1297 = vadd.f32 %v1283, %v1294
        %v1298 = vadd.f32 %v1284, %v1294
        %v1299 = vadd.f32 %v1285, %v1294
        %v1300 = vadd.f32 %v1286, %v1294
        %v1301 = vadd.f32 %v1287, %v1294
        %v1302 = vadd.f32 %v1288, %v1294
        %v1303 = vadd.f32 %v1289, %v1294
        %v1312 = vrot.slane %v1297, 7
        %v1313 = vrot.slane %v1298, 6
        %v1314 = vrot.slane %v1299, 5
        %v1315 = vrot.slane %v1300, 4
        %v1316 = vrot.slane %v1301, 3
        %v1317 = vrot.slane %v1302, 2
        %v1318 = vrot.slane %v1303, 1
        %vm1319 = vcmask 1040384
        %v1320 = vsel %vm1319, %v1296, %v1312
        %vm1321 = vcmask 1042434
        %v1322 = vsel %vm1321, %v1313, %v1314
        %vm1323 = vcmask 1041408
        %v1324 = vsel %vm1323, %v1320, %v1322
        %vm1325 = vcmask 1044484
        %v1326 = vsel %vm1325, %v1315, %v1316
        %vm1327 = vcmask 1046534
        %v1328 = vsel %vm1327, %v1317, %v1318
        %vm1329 = vcmask 1045508
        %v1330 = vsel %vm1329, %v1326, %v1328
        %v1331 = vsel %vm276, %v1324, %v1330
        %1333 = vst [vmem:[%s164] sm:$0xff] %v1331
        %s1334 = sand.u32 %s93, 1
        %s1335 = scalar_lea.sflag [#allocation3], %s1334
        %s1336 = sand.u32 %s93, 1
        %s1337 = smul.addr %s1336, 8
        %s1338 = scalar_lea.vmem [#allocation2], %s1337
        // Predicated region
        $region33: #{densenet_forward.1} parent=31 // pred_check
          %p1339 = pneg %p103
        $region34: #{densenet_forward.1} parent=31 // pred_check_branch
          %1341 = sbr.rel (%p1339) target = $region36
        $region35: #{densenet_forward.1} parent=31 // pred_region
          %s1342 = smul.u32 8, %s17
          %1344 = vsyncadd %s1335, 0
          %s1345 = scalar_lea.hbm %s3, %s1342
          %s1347 = sshll.u32 %s1338, 4
          %s1348 = int_to_ptr.vmem [resolvable:$true] %s1347
          %s1349 = sshll.u32 %s1345, 4
          %s1350 = int_to_ptr.hbm [resolvable:$true] %s1349
          %1352 = dma.vmem_to_hbm [thread:$0]  %s1348, 128, %s1350, %s1335
        $region36: #{densenet_forward.1} parent=31 // pred_fallthru
          _
      $region32: #{densenet_forward.1} parent=5 // pred_fallthru
        _
      %p1353 = scmp.le.s32.totalorder 2, %s12
      // Predicated region
      $region37: #{densenet_forward.1} parent=5 // pred_check
        %p1354 = pneg %p1353
      $region38: #{densenet_forward.1} parent=5 // pred_check_branch
        %1356 = sbr.rel (%p1354) target = $region40
      $region39: #{densenet_forward.1} parent=5 // pred_region
        %s1357 = ssub.s32 %s12, 2
        // Predicated region
        $region41: #{densenet_forward.1} parent=39 // pred_check
          %p1358 = pneg %p109
        $region42: #{densenet_forward.1} parent=39 // pred_check_branch
          %1360 = sbr.rel (%p1358) target = $region44
        $region43: #{densenet_forward.1} parent=39 // pred_region
          %s1361 = sand.u32 %s94, 1
          %s1362 = scalar_lea.sflag [#allocation3], %s1361
          %s1363 = sand.u32 %s94, 1
          %s1364 = smul.addr %s1363, 8
          %s1365 = scalar_lea.vmem [#allocation2], %s1364
          %1367 = dma.done %s1362, 128
        $region44: #{densenet_forward.1} parent=39 // pred_fallthru
          _
      $region40: #{densenet_forward.1} parent=5 // pred_fallthru
        _
    $region6: #{densenet_forward.1} parent=1 // loop_footer
      %s16 = sadd.s32 1, %s12
    $region7: #{densenet_forward.1} parent=1 // loop_footer_branch
      %11 = sbr.rel target = $region3
    $region8: #{densenet_forward.1} parent=1 // loop_exit
      _
    %1368 = vsyncpa [#allocation3], 1
    %s1369 = scalar_lea.sflag [#allocation3], 1
    %1370 = vsyncpa %s1369, 1

</llo_original>
